<compile_context>
chip_gen: v6e
topology: v6e:2x2x1
jax: 0.10.0
libtpu: 0.0.40
codegen_flags: <defaults>
</compile_context>

<pallas_src>
import jax
import jax.numpy as jnp
from jax import lax
from jax.experimental import pallas as pl
from jax.experimental.pallas import tpu as pltpu

STATE_SPACE = 4      # CartPole-v0 observation_space.shape[0]
HIDDEN_LAYER = 3
ACTION_SPACE = 2     # CartPole-v0 action_space.n

LANE = 128           # lane width: one batch element per lane
SUB = 8              # sublane chunk: one (8, 128) f32 vreg per feature
ROWS_MAX = 512       # max 128-lane groups per grid step (512*128 = 64K elems)


def _policy_kernel(x_ref, w1_ref, b1_ref, w2_ref, b2_ref, o_ref):
    """Fused MLP forward on one feature-major batch block.

    x_ref : VMEM [STATE_SPACE, rows, 128]  (rows static per compile)
    w1_ref: SMEM [HIDDEN_LAYER, STATE_SPACE]   (PyTorch [out, in] layout)
    b1_ref: SMEM [HIDDEN_LAYER]
    w2_ref: SMEM [ACTION_SPACE, HIDDEN_LAYER]
    b2_ref: SMEM [ACTION_SPACE]
    o_ref : VMEM [ACTION_SPACE, rows, 128] f32 softmax probabilities
    """
    rows = x_ref.shape[1]
    sub = min(SUB, rows)            # rows is either <= SUB or a multiple of SUB
    n_chunks = rows // sub

    # Hoist the 20 SMEM scalar reads out of the per-chunk loop.
    w1 = [[w1_ref[j, k] for k in range(STATE_SPACE)]
          for j in range(HIDDEN_LAYER)]
    b1 = [b1_ref[j] for j in range(HIDDEN_LAYER)]
    w2 = [[w2_ref[a, j] for j in range(HIDDEN_LAYER)]
          for a in range(ACTION_SPACE)]
    b2 = [b2_ref[a] for a in range(ACTION_SPACE)]

    def chunk(r0):
        # Dense [sub, 128] slab per input feature (full sublane utilisation).
        xs = [x_ref[k, pl.ds(r0, sub), :].astype(jnp.float32)
              for k in range(STATE_SPACE)]

        # Layer 1: Linear(4 -> 3) + ReLU, unrolled scalar-broadcast FMAs (VPU).
        hidden = []
        for j in range(HIDDEN_LAYER):
            acc = xs[0] * w1[j][0]
            for k in range(1, STATE_SPACE):
                acc = acc + xs[k] * w1[j][k]
            hidden.append(jnp.maximum(acc + b1[j], 0.0))

        # Layer 2: Linear(3 -> 2), unrolled the same way.
        logits = []
        for a in range(ACTION_SPACE):
            acc = hidden[0] * w2[a][0]
            for k in range(1, HIDDEN_LAYER):
                acc = acc + hidden[k] * w2[a][k]
            logits.append(acc + b2[a])

        # Softmax over the two actions, fully elementwise (no XLU reduction).
        l0, l1 = logits
        m = jnp.maximum(l0, l1)
        e0 = jnp.exp(l0 - m)
        e1 = jnp.exp(l1 - m)
        s = e0 + e1
        inv = pl.reciprocal(s, approx=True)   # EUP slot (otherwise idle)
        inv = inv * (2.0 - s * inv)           # one Newton step -> ~f32 accurate
        o_ref[0, pl.ds(r0, sub), :] = e0 * inv
        o_ref[1, pl.ds(r0, sub), :] = e1 * inv

    if n_chunks == 1:
        chunk(0)
    else:
        def body(c, carry):
            chunk(pl.multiple_of(c * sub, sub))
            return carry
        # Per-chunk pipeline bounds live vregs; modest unroll gives the LLO
        # scheduler room without blowing the 64-vreg file.
        lax.fori_loop(0, n_chunks, body, None, unroll=min(n_chunks, 4))


def _round_up(n, m):
    return ((n + m - 1) // m) * m


def _choose_rows(n_groups):
    """128-lane groups per grid step.

    Small batches: one block covering the whole batch.  Large batches: a
    multiple of SUB (so the in-kernel chunk loop divides evenly), aiming for
    >= 4 grid steps (v7x megacore + DMA/compute overlap), capped so the
    double-buffered in+out block stays ~3 MiB of VMEM on every chip.
    """
    if n_groups <= SUB:
        return max(n_groups, 1)
    return min(ROWS_MAX, _round_up(pl.cdiv(n_groups, 4), SUB))


def policy_forward(x, w1, b1, w2, b2):
    """Forward pass of the CartPole policy network.

    x : [B, STATE_SPACE] (PyTorch row-major convention), f32 or bf16
    w1: [HIDDEN_LAYER, STATE_SPACE], b1: [HIDDEN_LAYER]  (PyTorch layout)
    w2: [ACTION_SPACE, HIDDEN_LAYER], b2: [ACTION_SPACE]
    returns: [B, ACTION_SPACE] softmax probabilities, f32.
    """
    B = x.shape[0]
    n_groups = max(pl.cdiv(B, LANE), 1)
    rows = _choose_rows(n_groups)
    n_blocks = pl.cdiv(n_groups, rows)
    n_groups_pad = n_blocks * rows
    b_pad = n_groups_pad * LANE

    # Single fused layout pass: pad -> view [n_groups_pad, 128, 4] ->
    # feature-major [4, n_groups_pad, 128] (lane axis = batch element).
    # A rollout loop that already keeps its state buffer in this layout can
    # feed the pallas_call below directly and skip this pass entirely.
    x_p = jnp.pad(x, ((0, b_pad - B), (0, 0)))
    x_blocks = jnp.transpose(x_p.reshape(n_groups_pad, LANE, STATE_SPACE),
                             (2, 0, 1))

    smem = pl.BlockSpec(memory_space=pltpu.MemorySpace.SMEM)
    out_blocks = pl.pallas_call(
        _policy_kernel,
        out_shape=jax.ShapeDtypeStruct((ACTION_SPACE, n_groups_pad, LANE),
                                       jnp.float32),
        grid=(n_blocks,),
        in_specs=[
            pl.BlockSpec((STATE_SPACE, rows, LANE), lambda i: (0, i, 0)),
            smem,   # w1
            smem,   # b1
            smem,   # w2
            smem,   # b2
        ],
        out_specs=pl.BlockSpec((ACTION_SPACE, rows, LANE),
                               lambda i: (0, i, 0)),
        compiler_params=pltpu.CompilerParams(
            dimension_semantics=("parallel",)),
    )(x_blocks,
      w1.astype(jnp.float32), b1.astype(jnp.float32),
      w2.astype(jnp.float32), b2.astype(jnp.float32))

    # Back to PyTorch [B, ACTION_SPACE] layout (output is only 8 B/element).
    out = jnp.transpose(out_blocks, (1, 2, 0)).reshape(b_pad, ACTION_SPACE)
    return out[:B]


def init_params(key):
    """PyTorch nn.Linear-style init (U[-1/sqrt(fan_in), +]), [out, in] layout."""
    k1, k2, k3, k4 = jax.random.split(key, 4)
    bound1 = 1.0 / jnp.sqrt(jnp.float32(STATE_SPACE))
    bound2 = 1.0 / jnp.sqrt(jnp.float32(HIDDEN_LAYER))
    w1 = jax.random.uniform(k1, (HIDDEN_LAYER, STATE_SPACE), jnp.float32,
                            -bound1, bound1)
    b1 = jax.random.uniform(k2, (HIDDEN_LAYER,), jnp.float32, -bound1, bound1)
    w2 = jax.random.uniform(k3, (ACTION_SPACE, HIDDEN_LAYER), jnp.float32,
                            -bound2, bound2)
    b2 = jax.random.uniform(k4, (ACTION_SPACE,), jnp.float32, -bound2, bound2)
    return w1, b1, w2, b2


if __name__ == "__main__":
    key = jax.random.PRNGKey(0)
    k_params, k_x = jax.random.split(key)

    w1, b1, w2, b2 = init_params(k_params)

    def reference(xv):
        h = jnp.maximum(xv @ w1.T + b1, 0.0)
        return jax.nn.softmax(h @ w2.T + b2, axis=-1)

    # B=200: single-block small-batch path (ragged pad, sub < 8).
    # B=6000: multi-block grid (3 blocks of 16 groups) + 2-chunk inner loop.
    for B in (200, 6000):
        x = jax.random.normal(jax.random.fold_in(k_x, B),
                              (B, STATE_SPACE), dtype=jnp.float32)
        out = jax.block_until_ready(policy_forward(x, w1, b1, w2, b2))
        ref = reference(x)
        assert out.shape == (B, ACTION_SPACE)
        err = float(jnp.max(jnp.abs(out - ref)))
        assert jnp.allclose(out, ref, atol=1e-5, rtol=1e-5), err
        assert jnp.allclose(jnp.sum(out, axis=-1), 1.0, atol=1e-5)

    print("KERNEL_OK")
</pallas_src>

<mosaic_0001>
module attributes {stable_mosaic.version = 11 : i64} {
  func.func @_policy_kernel(%arg0: i32, %arg1: memref<4x2x128xf32, #tpu.memory_space<vmem>>, %arg2: memref<3x4xf32, #tpu.memory_space<smem>>, %arg3: memref<3xf32, #tpu.memory_space<smem>>, %arg4: memref<2x3xf32, #tpu.memory_space<smem>>, %arg5: memref<2xf32, #tpu.memory_space<smem>>, %arg6: memref<2x2x128xf32, #tpu.memory_space<vmem>>) attributes {dimension_semantics = [#tpu.dimension_semantics<parallel>], iteration_bounds = array<i64: 1>, scalar_prefetch = 0 : i64, scratch_operands = 0 : i64, tpu.core_type = #tpu.core_type<tc>, window_params = [{transform_indices = @transform_0, window_bounds = array<i64: 4, 2, 128>}, {transform_indices = @transform_1, window_bounds = array<i64: 3, 4>}, {transform_indices = @transform_2, window_bounds = array<i64: 3>}, {transform_indices = @transform_3, window_bounds = array<i64: 2, 3>}, {transform_indices = @transform_4, window_bounds = array<i64: 2>}, {transform_indices = @transform_5, window_bounds = array<i64: 2, 2, 128>}]} {
    %c0 = arith.constant 0 : index
    %c0_0 = arith.constant 0 : index
    %0 = memref.load %arg2[%c0, %c0_0] : memref<3x4xf32, #tpu.memory_space<smem>>
    %c0_1 = arith.constant 0 : index
    %c1 = arith.constant 1 : index
    %1 = memref.load %arg2[%c0_1, %c1] : memref<3x4xf32, #tpu.memory_space<smem>>
    %c0_2 = arith.constant 0 : index
    %c2 = arith.constant 2 : index
    %2 = memref.load %arg2[%c0_2, %c2] : memref<3x4xf32, #tpu.memory_space<smem>>
    %c0_3 = arith.constant 0 : index
    %c3 = arith.constant 3 : index
    %3 = memref.load %arg2[%c0_3, %c3] : memref<3x4xf32, #tpu.memory_space<smem>>
    %c1_4 = arith.constant 1 : index
    %c0_5 = arith.constant 0 : index
    %4 = memref.load %arg2[%c1_4, %c0_5] : memref<3x4xf32, #tpu.memory_space<smem>>
    %c1_6 = arith.constant 1 : index
    %c1_7 = arith.constant 1 : index
    %5 = memref.load %arg2[%c1_6, %c1_7] : memref<3x4xf32, #tpu.memory_space<smem>>
    %c1_8 = arith.constant 1 : index
    %c2_9 = arith.constant 2 : index
    %6 = memref.load %arg2[%c1_8, %c2_9] : memref<3x4xf32, #tpu.memory_space<smem>>
    %c1_10 = arith.constant 1 : index
    %c3_11 = arith.constant 3 : index
    %7 = memref.load %arg2[%c1_10, %c3_11] : memref<3x4xf32, #tpu.memory_space<smem>>
    %c2_12 = arith.constant 2 : index
    %c0_13 = arith.constant 0 : index
    %8 = memref.load %arg2[%c2_12, %c0_13] : memref<3x4xf32, #tpu.memory_space<smem>>
    %c2_14 = arith.constant 2 : index
    %c1_15 = arith.constant 1 : index
    %9 = memref.load %arg2[%c2_14, %c1_15] : memref<3x4xf32, #tpu.memory_space<smem>>
    %c2_16 = arith.constant 2 : index
    %c2_17 = arith.constant 2 : index
    %10 = memref.load %arg2[%c2_16, %c2_17] : memref<3x4xf32, #tpu.memory_space<smem>>
    %c2_18 = arith.constant 2 : index
    %c3_19 = arith.constant 3 : index
    %11 = memref.load %arg2[%c2_18, %c3_19] : memref<3x4xf32, #tpu.memory_space<smem>>
    %c0_20 = arith.constant 0 : index
    %12 = memref.load %arg3[%c0_20] : memref<3xf32, #tpu.memory_space<smem>>
    %c1_21 = arith.constant 1 : index
    %13 = memref.load %arg3[%c1_21] : memref<3xf32, #tpu.memory_space<smem>>
    %c2_22 = arith.constant 2 : index
    %14 = memref.load %arg3[%c2_22] : memref<3xf32, #tpu.memory_space<smem>>
    %c0_23 = arith.constant 0 : index
    %c0_24 = arith.constant 0 : index
    %15 = memref.load %arg4[%c0_23, %c0_24] : memref<2x3xf32, #tpu.memory_space<smem>>
    %c0_25 = arith.constant 0 : index
    %c1_26 = arith.constant 1 : index
    %16 = memref.load %arg4[%c0_25, %c1_26] : memref<2x3xf32, #tpu.memory_space<smem>>
    %c0_27 = arith.constant 0 : index
    %c2_28 = arith.constant 2 : index
    %17 = memref.load %arg4[%c0_27, %c2_28] : memref<2x3xf32, #tpu.memory_space<smem>>
    %c1_29 = arith.constant 1 : index
    %c0_30 = arith.constant 0 : index
    %18 = memref.load %arg4[%c1_29, %c0_30] : memref<2x3xf32, #tpu.memory_space<smem>>
    %c1_31 = arith.constant 1 : index
    %c1_32 = arith.constant 1 : index
    %19 = memref.load %arg4[%c1_31, %c1_32] : memref<2x3xf32, #tpu.memory_space<smem>>
    %c1_33 = arith.constant 1 : index
    %c2_34 = arith.constant 2 : index
    %20 = memref.load %arg4[%c1_33, %c2_34] : memref<2x3xf32, #tpu.memory_space<smem>>
    %c0_35 = arith.constant 0 : index
    %21 = memref.load %arg5[%c0_35] : memref<2xf32, #tpu.memory_space<smem>>
    %c1_36 = arith.constant 1 : index
    %22 = memref.load %arg5[%c1_36] : memref<2xf32, #tpu.memory_space<smem>>
    %c0_37 = arith.constant 0 : index
    %c0_38 = arith.constant 0 : index
    %c0_39 = arith.constant 0 : index
    %23 = vector.load %arg1[%c0_37, %c0_38, %c0_39] : memref<4x2x128xf32, #tpu.memory_space<vmem>>, vector<1x2x128xf32>
    %24 = vector.shape_cast %23 : vector<1x2x128xf32> to vector<2x128xf32>
    %c1_40 = arith.constant 1 : index
    %c0_41 = arith.constant 0 : index
    %c0_42 = arith.constant 0 : index
    %25 = vector.load %arg1[%c1_40, %c0_41, %c0_42] : memref<4x2x128xf32, #tpu.memory_space<vmem>>, vector<1x2x128xf32>
    %26 = vector.shape_cast %25 : vector<1x2x128xf32> to vector<2x128xf32>
    %c2_43 = arith.constant 2 : index
    %c0_44 = arith.constant 0 : index
    %c0_45 = arith.constant 0 : index
    %27 = vector.load %arg1[%c2_43, %c0_44, %c0_45] : memref<4x2x128xf32, #tpu.memory_space<vmem>>, vector<1x2x128xf32>
    %28 = vector.shape_cast %27 : vector<1x2x128xf32> to vector<2x128xf32>
    %c3_46 = arith.constant 3 : index
    %c0_47 = arith.constant 0 : index
    %c0_48 = arith.constant 0 : index
    %29 = vector.load %arg1[%c3_46, %c0_47, %c0_48] : memref<4x2x128xf32, #tpu.memory_space<vmem>>, vector<1x2x128xf32>
    %30 = vector.shape_cast %29 : vector<1x2x128xf32> to vector<2x128xf32>
    %31 = vector.broadcast %0 : f32 to vector<2x128xf32>
    %32 = arith.mulf %24, %31 : vector<2x128xf32>
    %33 = vector.broadcast %1 : f32 to vector<2x128xf32>
    %34 = arith.mulf %26, %33 : vector<2x128xf32>
    %35 = arith.addf %32, %34 : vector<2x128xf32>
    %36 = vector.broadcast %2 : f32 to vector<2x128xf32>
    %37 = arith.mulf %28, %36 : vector<2x128xf32>
    %38 = arith.addf %35, %37 : vector<2x128xf32>
    %39 = vector.broadcast %3 : f32 to vector<2x128xf32>
    %40 = arith.mulf %30, %39 : vector<2x128xf32>
    %41 = arith.addf %38, %40 : vector<2x128xf32>
    %42 = vector.broadcast %12 : f32 to vector<2x128xf32>
    %43 = arith.addf %41, %42 : vector<2x128xf32>
    %cst = arith.constant 0.000000e+00 : f32
    %44 = vector.broadcast %cst : f32 to vector<2x128xf32>
    %45 = arith.maximumf %43, %44 : vector<2x128xf32>
    %46 = vector.broadcast %4 : f32 to vector<2x128xf32>
    %47 = arith.mulf %24, %46 : vector<2x128xf32>
    %48 = vector.broadcast %5 : f32 to vector<2x128xf32>
    %49 = arith.mulf %26, %48 : vector<2x128xf32>
    %50 = arith.addf %47, %49 : vector<2x128xf32>
    %51 = vector.broadcast %6 : f32 to vector<2x128xf32>
    %52 = arith.mulf %28, %51 : vector<2x128xf32>
    %53 = arith.addf %50, %52 : vector<2x128xf32>
    %54 = vector.broadcast %7 : f32 to vector<2x128xf32>
    %55 = arith.mulf %30, %54 : vector<2x128xf32>
    %56 = arith.addf %53, %55 : vector<2x128xf32>
    %57 = vector.broadcast %13 : f32 to vector<2x128xf32>
    %58 = arith.addf %56, %57 : vector<2x128xf32>
    %cst_49 = arith.constant 0.000000e+00 : f32
    %59 = vector.broadcast %cst_49 : f32 to vector<2x128xf32>
    %60 = arith.maximumf %58, %59 : vector<2x128xf32>
    %61 = vector.broadcast %8 : f32 to vector<2x128xf32>
    %62 = arith.mulf %24, %61 : vector<2x128xf32>
    %63 = vector.broadcast %9 : f32 to vector<2x128xf32>
    %64 = arith.mulf %26, %63 : vector<2x128xf32>
    %65 = arith.addf %62, %64 : vector<2x128xf32>
    %66 = vector.broadcast %10 : f32 to vector<2x128xf32>
    %67 = arith.mulf %28, %66 : vector<2x128xf32>
    %68 = arith.addf %65, %67 : vector<2x128xf32>
    %69 = vector.broadcast %11 : f32 to vector<2x128xf32>
    %70 = arith.mulf %30, %69 : vector<2x128xf32>
    %71 = arith.addf %68, %70 : vector<2x128xf32>
    %72 = vector.broadcast %14 : f32 to vector<2x128xf32>
    %73 = arith.addf %71, %72 : vector<2x128xf32>
    %cst_50 = arith.constant 0.000000e+00 : f32
    %74 = vector.broadcast %cst_50 : f32 to vector<2x128xf32>
    %75 = arith.maximumf %73, %74 : vector<2x128xf32>
    %76 = vector.broadcast %15 : f32 to vector<2x128xf32>
    %77 = arith.mulf %45, %76 : vector<2x128xf32>
    %78 = vector.broadcast %16 : f32 to vector<2x128xf32>
    %79 = arith.mulf %60, %78 : vector<2x128xf32>
    %80 = arith.addf %77, %79 : vector<2x128xf32>
    %81 = vector.broadcast %17 : f32 to vector<2x128xf32>
    %82 = arith.mulf %75, %81 : vector<2x128xf32>
    %83 = arith.addf %80, %82 : vector<2x128xf32>
    %84 = vector.broadcast %21 : f32 to vector<2x128xf32>
    %85 = arith.addf %83, %84 : vector<2x128xf32>
    %86 = vector.broadcast %18 : f32 to vector<2x128xf32>
    %87 = arith.mulf %45, %86 : vector<2x128xf32>
    %88 = vector.broadcast %19 : f32 to vector<2x128xf32>
    %89 = arith.mulf %60, %88 : vector<2x128xf32>
    %90 = arith.addf %87, %89 : vector<2x128xf32>
    %91 = vector.broadcast %20 : f32 to vector<2x128xf32>
    %92 = arith.mulf %75, %91 : vector<2x128xf32>
    %93 = arith.addf %90, %92 : vector<2x128xf32>
    %94 = vector.broadcast %22 : f32 to vector<2x128xf32>
    %95 = arith.addf %93, %94 : vector<2x128xf32>
    %96 = arith.maximumf %85, %95 : vector<2x128xf32>
    %97 = arith.subf %85, %96 : vector<2x128xf32>
    %98 = math.exp %97 : vector<2x128xf32>
    %99 = arith.subf %95, %96 : vector<2x128xf32>
    %100 = math.exp %99 : vector<2x128xf32>
    %101 = arith.addf %98, %100 : vector<2x128xf32>
    %102 = tpu.reciprocal %101 {approx = true} : vector<2x128xf32> -> vector<2x128xf32>
    %103 = arith.mulf %101, %102 : vector<2x128xf32>
    %cst_51 = arith.constant 2.000000e+00 : f32
    %104 = vector.broadcast %cst_51 : f32 to vector<2x128xf32>
    %105 = arith.subf %104, %103 : vector<2x128xf32>
    %106 = arith.mulf %102, %105 : vector<2x128xf32>
    %107 = arith.mulf %98, %106 : vector<2x128xf32>
    %c0_52 = arith.constant 0 : index
    %c0_53 = arith.constant 0 : index
    %c0_54 = arith.constant 0 : index
    %108 = vector.load %arg6[%c0_52, %c0_53, %c0_54] : memref<2x2x128xf32, #tpu.memory_space<vmem>>, vector<1x2x128xf32>
    %109 = vector.shape_cast %108 : vector<1x2x128xf32> to vector<2x128xf32>
    %110 = vector.shape_cast %107 : vector<2x128xf32> to vector<1x2x128xf32>
    tpu.vector_store %arg6[%c0_52, %c0_53, %c0_54], %110 {strides = array<i32>} : memref<2x2x128xf32, #tpu.memory_space<vmem>>, vector<1x2x128xf32>,
    %111 = arith.mulf %100, %106 : vector<2x128xf32>
    %c1_55 = arith.constant 1 : index
    %c0_56 = arith.constant 0 : index
    %c0_57 = arith.constant 0 : index
    %112 = vector.load %arg6[%c1_55, %c0_56, %c0_57] : memref<2x2x128xf32, #tpu.memory_space<vmem>>, vector<1x2x128xf32>
    %113 = vector.shape_cast %112 : vector<1x2x128xf32> to vector<2x128xf32>
    %114 = vector.shape_cast %111 : vector<2x128xf32> to vector<1x2x128xf32>
    tpu.vector_store %arg6[%c1_55, %c0_56, %c0_57], %114 {strides = array<i32>} : memref<2x2x128xf32, #tpu.memory_space<vmem>>, vector<1x2x128xf32>,
    return
  }
  func.func @transform_0(%arg0: i32) -> (i32, i32, i32) {
    %c0_i32 = arith.constant 0 : i32
    %c0_i32_0 = arith.constant 0 : i32
    %c0_i32_1 = arith.constant 0 : i32
    return %c0_i32, %arg0, %c0_i32_0 : i32, i32, i32
  }
  func.func @transform_1(%arg0: i32) -> (i32, i32) {
    %c0_i32 = arith.constant 0 : i32
    %c0_i32_0 = arith.constant 0 : i32
    %c0_i32_1 = arith.constant 0 : i32
    return %c0_i32, %c0_i32_0 : i32, i32
  }
  func.func @transform_2(%arg0: i32) -> i32 {
    %c0_i32 = arith.constant 0 : i32
    %c0_i32_0 = arith.constant 0 : i32
    return %c0_i32 : i32
  }
  func.func @transform_3(%arg0: i32) -> (i32, i32) {
    %c0_i32 = arith.constant 0 : i32
    %c0_i32_0 = arith.constant 0 : i32
    %c0_i32_1 = arith.constant 0 : i32
    return %c0_i32, %c0_i32_0 : i32, i32
  }
  func.func @transform_4(%arg0: i32) -> i32 {
    %c0_i32 = arith.constant 0 : i32
    %c0_i32_0 = arith.constant 0 : i32
    return %c0_i32 : i32
  }
  func.func @transform_5(%arg0: i32) -> (i32, i32, i32) {
    %c0_i32 = arith.constant 0 : i32
    %c0_i32_0 = arith.constant 0 : i32
    %c0_i32_1 = arith.constant 0 : i32
    return %c0_i32, %arg0, %c0_i32_0 : i32, i32, i32
  }
}

</mosaic_0001>

<llo_original>
// kernel: tpu_custom_call.1
$region0: #{tpu_custom_call.1}
  #allocation0 [shape = 'u32[]', space=smem, size = 0x4, offset = 0x4, fixed_abs, tag = 'smem constant byte address 0x4 - core index']
  #allocation1 [shape = 'u32[144,128]{1,0:T(1,128)}', space=vmem, size = 0x12000, scoped, tag = 'internal scratch']
  %s0 = inlined_call_operand.hbm [shape: f32[4,2,128], index: 0, kind: input, shape index: {}]
  %s1 = inlined_call_operand.hbm [shape: f32[3,4], index: 1, kind: input, shape index: {}]
  %s2 = inlined_call_operand.vmem [shape: f32[3], index: 2, kind: input, shape index: {}]
  %s3 = inlined_call_operand.vmem [shape: f32[2,3], index: 3, kind: input, shape index: {}]
  %s4 = inlined_call_operand.vmem [shape: f32[2], index: 4, kind: input, shape index: {}]
  %s5 = inlined_call_operand.hbm [shape: f32[2,2,128], index: 5, kind: output, shape index: {}]
  %s6 = sld [smem:[#allocation0]]
  $region50: #{tpu_custom_call.1} parent=0
    _
  %s8 = ssub.s32 1, %s6
  %s9 = scalar_select 0, %s8, %s6
  $region1: #{tpu_custom_call.1} parent=0
    #allocation2 [shape = 'u8[4096]{0}', space=vmem, size = 0x1000, scoped, tag = 'input window, operand 0, single buffered']
    #allocation3 [shape = 's32[1]{0}', space=sflag, size = 0x4, scoped, tag = 'scoped memory for tpu_custom_call.1']
    #allocation4 [shape = 's32[1]{0}', space=sflag, size = 0x4, scoped, tag = 'scoped memory for tpu_custom_call.1']
    #allocation5 [shape = 's32[1]{0}', space=sflag, size = 0x4, scoped, tag = 'scoped memory for tpu_custom_call.1']
    #allocation6 [shape = 's32[1]{0}', space=sflag, size = 0x4, scoped, tag = 'scoped memory for tpu_custom_call.1']
    #allocation7 [shape = 'u8[2048]{0}', space=smem, size = 0x800, scoped, tag = 'input window, operand 1, single buffered']
    #allocation8 [shape = 'u8[512]{0}', space=smem, size = 0x200, scoped, tag = 'input window, operand 2, single buffered']
    #allocation9 [shape = 'u8[1024]{0}', space=smem, size = 0x400, scoped, tag = 'input window, operand 3, single buffered']
    #allocation10 [shape = 's32[1]{0}', space=sflag, size = 0x4, scoped, tag = 'scoped memory for tpu_custom_call.1']
    #allocation11 [shape = 'u8[512]{0}', space=smem, size = 0x200, scoped, tag = 'input window, operand 4, single buffered']
    #allocation12 [shape = 'u8[2048]{0}', space=vmem, size = 0x800, scoped, tag = 'output window, operand 0, single buffered']
    %10 = vsyncpa [#allocation3], 0
    %11 = vsyncpa [#allocation5], 0
    %12 = vsyncpa [#allocation6], 0
    %13 = vsyncpa [#allocation10], 0
    %14 = vsyncpa [#allocation4], 0
    // Predicated region
    $region2: #{tpu_custom_call.1} parent=1 // pred_check
      _
    $region3: #{tpu_custom_call.1} parent=1 // pred_check_branch
      %16 = sbr.rel (0) target = $region5
    $region4: #{tpu_custom_call.1} parent=1 // pred_region
      %s18 = ssub.s32 128, 128
      %19 = vsyncadd [#allocation3], %s18
      %s20 = sshll.u32 [#allocation2], 4
      %s21 = int_to_ptr.vmem [resolvable:$true] %s20
      %26 = dma.hbm_to_vmem [thread:$0]  %s0, 128, %s21, [#allocation3], 32, 32, 2
    $region5: #{tpu_custom_call.1} parent=1 // pred_fallthru
      _
    // Predicated region
    $region6: #{tpu_custom_call.1} parent=1 // pred_check
      _
    $region7: #{tpu_custom_call.1} parent=1 // pred_check_branch
      %28 = sbr.rel (0) target = $region9
    $region8: #{tpu_custom_call.1} parent=1 // pred_region
      %s30 = ssub.s32 64, 64
      %31 = vsyncadd [#allocation5], %s30
      %34 = dma.hbm_to_smem %s1, 64, [#allocation7], [#allocation5]
    $region9: #{tpu_custom_call.1} parent=1 // pred_fallthru
      _
    // Predicated region
    $region10: #{tpu_custom_call.1} parent=1 // pred_check
      _
    $region11: #{tpu_custom_call.1} parent=1 // pred_check_branch
      %36 = sbr.rel (0) target = $region13
    $region12: #{tpu_custom_call.1} parent=1 // pred_region
      %s38 = ssub.s32 16, 16
      %39 = vsyncadd [#allocation6], %s38
      %s41 = sshll.u32 %s2, 4
      %s42 = int_to_ptr.vmem [resolvable:$true] %s41
      %44 = dma.vmem_to_smem %s42, 16, [#allocation8], [#allocation6]
    $region13: #{tpu_custom_call.1} parent=1 // pred_fallthru
      _
    // Predicated region
    $region14: #{tpu_custom_call.1} parent=1 // pred_check
      _
    $region15: #{tpu_custom_call.1} parent=1 // pred_check_branch
      %46 = sbr.rel (0) target = $region17
    $region16: #{tpu_custom_call.1} parent=1 // pred_region
      %s48 = ssub.s32 32, 32
      %49 = vsyncadd [#allocation10], %s48
      %s51 = sshll.u32 %s3, 4
      %s52 = int_to_ptr.vmem [resolvable:$true] %s51
      %54 = dma.vmem_to_smem %s52, 32, [#allocation9], [#allocation10]
    $region17: #{tpu_custom_call.1} parent=1 // pred_fallthru
      _
    // Predicated region
    $region18: #{tpu_custom_call.1} parent=1 // pred_check
      _
    $region19: #{tpu_custom_call.1} parent=1 // pred_check_branch
      %56 = sbr.rel (0) target = $region21
    $region20: #{tpu_custom_call.1} parent=1 // pred_region
      %s58 = ssub.s32 16, 16
      %59 = vsyncadd [#allocation10], %s58
      %s61 = sshll.u32 %s4, 4
      %s62 = int_to_ptr.vmem [resolvable:$true] %s61
      %64 = dma.vmem_to_smem %s62, 16, [#allocation11], [#allocation10]
    $region21: #{tpu_custom_call.1} parent=1 // pred_fallthru
      _
    // Predicated region
    $region22: #{tpu_custom_call.1} parent=1 // pred_check
      _
    $region23: #{tpu_custom_call.1} parent=1 // pred_check_branch
      %66 = sbr.rel (0) target = $region25
    $region24: #{tpu_custom_call.1} parent=1 // pred_region
      %67 = dma.done [#allocation3], 128
    $region25: #{tpu_custom_call.1} parent=1 // pred_fallthru
      _
    // Predicated region
    $region26: #{tpu_custom_call.1} parent=1 // pred_check
      _
    $region27: #{tpu_custom_call.1} parent=1 // pred_check_branch
      %69 = sbr.rel (0) target = $region29
    $region28: #{tpu_custom_call.1} parent=1 // pred_region
      %70 = dma.done [#allocation5], 64
    $region29: #{tpu_custom_call.1} parent=1 // pred_fallthru
      _
    // Predicated region
    $region30: #{tpu_custom_call.1} parent=1 // pred_check
      _
    $region31: #{tpu_custom_call.1} parent=1 // pred_check_branch
      %72 = sbr.rel (0) target = $region33
    $region32: #{tpu_custom_call.1} parent=1 // pred_region
      %73 = dma.done [#allocation6], 16
    $region33: #{tpu_custom_call.1} parent=1 // pred_fallthru
      _
    // Predicated region
    $region34: #{tpu_custom_call.1} parent=1 // pred_check
      _
    $region35: #{tpu_custom_call.1} parent=1 // pred_check_branch
      %75 = sbr.rel (0) target = $region37
    $region36: #{tpu_custom_call.1} parent=1 // pred_region
      %76 = dma.done [#allocation10], 32
    $region37: #{tpu_custom_call.1} parent=1 // pred_fallthru
      _
    // Predicated region
    $region38: #{tpu_custom_call.1} parent=1 // pred_check
      _
    $region39: #{tpu_custom_call.1} parent=1 // pred_check_branch
      %78 = sbr.rel (0) target = $region41
    $region40: #{tpu_custom_call.1} parent=1 // pred_region
      %79 = dma.done [#allocation10], 16
    $region41: #{tpu_custom_call.1} parent=1 // pred_fallthru
      _
    %80 = sfence
    %s81 = sld [smem:[#allocation7]]
    %s82 = sld [smem:[#allocation7 + $0x1]]
    %s83 = sld [smem:[#allocation7 + $0x2]]
    %s84 = sld [smem:[#allocation7 + $0x3]]
    %s85 = sld [smem:[#allocation7 + $0x80]]
    %s86 = sld [smem:[#allocation7 + $0x81]]
    %s87 = sld [smem:[#allocation7 + $0x82]]
    %s88 = sld [smem:[#allocation7 + $0x83]]
    %s89 = sld [smem:[#allocation7 + $0x100]]
    %s90 = sld [smem:[#allocation7 + $0x101]]
    %s91 = sld [smem:[#allocation7 + $0x102]]
    %s92 = sld [smem:[#allocation7 + $0x103]]
    %s93 = sld [smem:[#allocation8]]
    %s94 = sld [smem:[#allocation8 + $0x1]]
    %s95 = sld [smem:[#allocation8 + $0x2]]
    %s96 = sld [smem:[#allocation9]]
    %s97 = sld [smem:[#allocation9 + $0x1]]
    %s98 = sld [smem:[#allocation9 + $0x2]]
    %s99 = sld [smem:[#allocation9 + $0x80]]
    %s100 = sld [smem:[#allocation9 + $0x81]]
    %s101 = sld [smem:[#allocation9 + $0x82]]
    %s102 = sld [smem:[#allocation11]]
    %s103 = sld [smem:[#allocation11 + $0x1]]
    %v104 = vld [vmem:[#allocation2] sm:$0x3]
    %s105 = scalar_lea.vmem [#allocation2], 2
    %v106 = vld [vmem:[%s105] sm:$0x3]
    %s107 = scalar_lea.vmem [#allocation2], 4
    %v108 = vld [vmem:[%s107] sm:$0x3]
    %s109 = scalar_lea.vmem [#allocation2], 6
    %v110 = vld [vmem:[%s109] sm:$0x3]
    %v111 = vstv %s81
    %v112 = vmul.f32 %v104, %v111
    %v113 = vstv %s82
    %v114 = vmul.f32 %v106, %v113
    %v115 = vadd.f32 %v112, %v114
    %v116 = vstv %s83
    %v117 = vmul.f32 %v108, %v116
    %v118 = vadd.f32 %v115, %v117
    %v119 = vstv %s84
    %v120 = vmul.f32 %v110, %v119
    %v121 = vadd.f32 %v118, %v120
    %v122 = vstv %s93
    %v123 = vadd.f32 %v121, %v122
    %v124 = vmax.f32 %v123, 0.0
    %v125 = vstv %s85
    %v126 = vmul.f32 %v104, %v125
    %v127 = vstv %s86
    %v128 = vmul.f32 %v106, %v127
    %v129 = vadd.f32 %v126, %v128
    %v130 = vstv %s87
    %v131 = vmul.f32 %v108, %v130
    %v132 = vadd.f32 %v129, %v131
    %v133 = vstv %s88
    %v134 = vmul.f32 %v110, %v133
    %v135 = vadd.f32 %v132, %v134
    %v136 = vstv %s94
    %v137 = vadd.f32 %v135, %v136
    %v138 = vmax.f32 %v137, 0.0
    %v139 = vstv %s89
    %v140 = vmul.f32 %v104, %v139
    %v141 = vstv %s90
    %v142 = vmul.f32 %v106, %v141
    %v143 = vadd.f32 %v140, %v142
    %v144 = vstv %s91
    %v145 = vmul.f32 %v108, %v144
    %v146 = vadd.f32 %v143, %v145
    %v147 = vstv %s92
    %v148 = vmul.f32 %v110, %v147
    %v149 = vadd.f32 %v146, %v148
    %v150 = vstv %s95
    %v151 = vadd.f32 %v149, %v150
    %v152 = vmax.f32 %v151, 0.0
    %v153 = vstv %s96
    %v154 = vmul.f32 %v124, %v153
    %v155 = vstv %s97
    %v156 = vmul.f32 %v138, %v155
    %v157 = vadd.f32 %v154, %v156
    %v158 = vstv %s98
    %v159 = vmul.f32 %v152, %v158
    %v160 = vadd.f32 %v157, %v159
    %v161 = vstv %s102
    %v162 = vadd.f32 %v160, %v161
    %v163 = vstv %s99
    %v164 = vmul.f32 %v124, %v163
    %v165 = vstv %s100
    %v166 = vmul.f32 %v138, %v165
    %v167 = vadd.f32 %v164, %v166
    %v168 = vstv %s101
    %v169 = vmul.f32 %v152, %v168
    %v170 = vadd.f32 %v167, %v169
    %v171 = vstv %s103
    %v172 = vadd.f32 %v170, %v171
    %v173 = vmax.f32 %v162, %v172
    %v174 = vsub.f32 %v162, %v173
    %v175 = vmul.f32 %v174, 1.442695
    %v176 = vpow.pop %v175
    %v177 = vsub.f32 %v172, %v173
    %v178 = vmul.f32 %v177, 1.442695
    %v179 = vpow.pop %v178
    %v180 = vadd.f32 %v176, %v179
    %v181 = vrcp.pop %v180
    %v182 = vmul.f32 %v180, %v181
    %v183 = vsub.f32 2.0, %v182
    %v184 = vmul.f32 %v181, %v183
    %v185 = vmul.f32 %v176, %v184
    %186 = vst [vmem:[#allocation12] sm:$0x3] %v185
    %v187 = vmul.f32 %v179, %v184
    %s188 = scalar_lea.vmem [#allocation12], 2
    %189 = vst [vmem:[%s188] sm:$0x3] %v187
    // Predicated region
    $region42: #{tpu_custom_call.1} parent=1 // pred_check
      _
    $region43: #{tpu_custom_call.1} parent=1 // pred_check_branch
      %191 = sbr.rel (0) target = $region45
    $region44: #{tpu_custom_call.1} parent=1 // pred_region
      %s193 = ssub.s32 64, 64
      %194 = vsyncadd [#allocation4], %s193
      %s195 = sshll.u32 [#allocation12], 4
      %s196 = int_to_ptr.vmem [resolvable:$true] %s195
      %201 = dma.vmem_to_hbm [thread:$0]  %s196, 64, %s5, [#allocation4], 32, 32, 2
    $region45: #{tpu_custom_call.1} parent=1 // pred_fallthru
      _
    // Predicated region
    $region46: #{tpu_custom_call.1} parent=1 // pred_check
      _
    $region47: #{tpu_custom_call.1} parent=1 // pred_check_branch
      %203 = sbr.rel (0) target = $region49
    $region48: #{tpu_custom_call.1} parent=1 // pred_region
      %204 = dma.done [#allocation4], 64
    $region49: #{tpu_custom_call.1} parent=1 // pred_fallthru
      _
    %205 = vsyncpa [#allocation3], 1
    %206 = vsyncpa [#allocation4], 1
    %207 = vsyncpa [#allocation5], 1
    %208 = vsyncpa [#allocation6], 1
    %209 = vsyncpa [#allocation10], 1

</llo_original>
